<compile_context>
chip_gen: v7x
topology: tpu7x:2x2x1
jax: 0.10.0
libtpu: 0.0.40
codegen_flags: <defaults>
</compile_context>

<pallas_src>
import functools

import jax
import jax.numpy as jnp
from jax.experimental import pallas as pl
from jax.experimental.pallas import tpu as pltpu


# ----------------------------- Pallas kernel --------------------------------
def fused_embed_mlp_kernel(x_ref, w1_ref, w2_ref, b2_ref, w3_ref, b3_ref, o_ref,
                           *, n_a, n_b):
    """Transposed layout: activations are [features, TM] (batch on lanes).

    x_ref : (4, TM) int32   rows 0,1 = embedded category indices, rows 2,3 pass-through
    w1_ref: (32, n_a+n_b+3) f32  packed [w1@emb_a^T | w1@emb_b^T | w1_nonemb | b1]
    w2_ref: (16, 32) f32 (BN1 folded),  b2_ref (16,1) f32
    w3_ref: (1, 16)  f32 (BN2 folded),  b3_ref (1,1)  f32
    o_ref : (1, TM)  f32   sigmoid output, lane-dense
    """
    f32 = jnp.float32
    tm = x_ref.shape[1]
    n_rows = w1_ref.shape[1]                       # n_a + n_b + 2 + 1 (bias row)

    idx_a = x_ref[0:1, :]                          # (1, tm) int32
    idx_b = x_ref[1:2, :]
    row = jax.lax.broadcasted_iota(jnp.int32, (n_rows, tm), 0)

    # Single layer-1 RHS: one-hot(cat_a) | one-hot(cat_b) | x2 | x3 | ones(bias row).
    # NOTE: out-of-range category indices yield an all-zero one-hot (silent), matching
    # the previous kernel; nn.Embedding would raise instead.
    cat = ((row == idx_a) | (row == (idx_b + n_a)) | (row == n_rows - 1)).astype(f32)
    x2 = x_ref[2:3, :].astype(f32)                 # continuous / non-embedded cols (f32)
    x3 = x_ref[3:4, :].astype(f32)
    rhs = (cat
           + jnp.where(row == n_a + n_b, x2, 0.0)
           + jnp.where(row == n_a + n_b + 1, x3, 0.0))            # (n_rows, tm)

    # --- layer 1: fused Linear (+bias via ones row) -> ReLU (BN1 folded into layer 2)
    h = jnp.dot(w1_ref[...], rhs, preferred_element_type=f32)      # (32, tm)
    h = jnp.maximum(h, 0.0)

    # --- layer 2: (BN1-folded) Linear -> ReLU (BN2 folded into layer 3) ------
    h = jnp.dot(w2_ref[...], h, preferred_element_type=f32) + b2_ref[...]   # (16, tm)
    h = jnp.maximum(h, 0.0)

    # --- output layer + sigmoid (output_dim == 1 branch) ---------------------
    z = jnp.dot(w3_ref[...], h, preferred_element_type=f32) + b3_ref[...]   # (1, tm)
    o_ref[...] = jax.nn.sigmoid(z)                                  # lane-dense store


def _const_spec(shape):
    nd = len(shape)
    return pl.BlockSpec(shape, lambda i, _nd=nd: (0,) * _nd)


def _round_up(n, m):
    return ((n + m - 1) // m) * m


def mlp_embed_pallas(x_t, kparams, *, tm, n_a, n_b):
    """x_t: (4, B_pad) int32, B_pad multiple of tm, tm multiple of 128."""
    b_pad = x_t.shape[1]
    grid = (b_pad // tm,)
    kernel = functools.partial(fused_embed_mlp_kernel, n_a=n_a, n_b=n_b)
    in_specs = [pl.BlockSpec((x_t.shape[0], tm), lambda i: (0, i))]
    in_specs += [_const_spec(a.shape) for a in kparams]            # weights VMEM-resident
    out_specs = pl.BlockSpec((1, tm), lambda i: (0, i))
    n_in = kparams[0].shape[1]
    flops = 2 * b_pad * (n_in * 32 + 32 * 16 + 16 * 1)
    bytes_accessed = (x_t.size * 4 + b_pad * 4
                      + sum(int(a.size) * 4 for a in kparams))
    return pl.pallas_call(
        kernel,
        out_shape=jax.ShapeDtypeStruct((1, b_pad), jnp.float32),
        grid=grid,
        in_specs=in_specs,
        out_specs=out_specs,
        compiler_params=pltpu.CompilerParams(
            dimension_semantics=("parallel",)),                    # megacore on v7x
        cost_estimate=pl.CostEstimate(
            flops=flops, transcendentals=b_pad, bytes_accessed=bytes_accessed),
    )(x_t, *kparams)


# --------------------------- parameter preparation ---------------------------
def prep_kernel_params(params):
    """Fold embeddings into w1, eval-mode BatchNorm into the next Linear; all f32."""
    f32 = jnp.float32
    w1t = params['w1'].T                                   # (32, 8)
    w1a = w1t[:, 0:2] @ params['emb_a'].T                  # (32, 5)   emb_a folded
    w1b = w1t[:, 2:6] @ params['emb_b'].T                  # (32, 10)  emb_b folded
    w1c = w1t[:, 6:8]                                      # (32, 2)   non-embedded cols
    b1t = params['b1'].T                                   # (32, 1)   bias column
    w1p = jnp.concatenate([w1a, w1b, w1c, b1t], axis=1)    # (32, 18)

    w2f = params['s1'].T * params['w2']                    # (32,16) row-scaled (BN1 fold)
    b2f = params['b2'] + params['t1'] @ params['w2']       # (1,16)
    w3f = params['s2'].T * params['w3']                    # (16,1)  (BN2 fold)
    b3f = params['b3'] + params['t2'] @ params['w3']       # (1,1)

    return (
        w1p.astype(f32),                                   # (32, 18)
        w2f.T.astype(f32),                                 # (16, 32)
        b2f.T.astype(f32),                                 # (16, 1)
        w3f.T.astype(f32),                                 # (1, 16)
        b3f.T.astype(f32),                                 # (1, 1)
    )


@functools.partial(jax.jit, static_argnames=("tm_max",))
def embedding_model_forward(params, x, tm_max=8192):
    """x: int32 [B, 4]; columns 0,1 are embedded, columns 2,3 pass through.

    tm_max=8192 keeps per-step VMEM ~2.5 MB (safe under the 16 MiB v5e scoped
    default) while leaving grid >= 2 at large B so v7x's two TensorCores both
    get work via the 'parallel' axis.
    """
    kparams = prep_kernel_params(params)
    n_a = params['emb_a'].shape[0]
    n_b = params['emb_b'].shape[0]
    B = x.shape[0]
    tm = min(tm_max, _round_up(B, 128))                    # batch tile on lanes (>=128)
    b_pad = _round_up(B, tm)
    # Feature-major (batch-on-lanes) layout for the kernel; pad with index 0 (valid).
    # TODO(synk): accept feature-major / narrower-dtype x from the caller to drop this pass.
    x_t = x.T
    if b_pad != B:
        x_t = jnp.pad(x_t, ((0, 0), (0, b_pad - B)))
    out = mlp_embed_pallas(x_t, kparams, tm=tm, n_a=n_a, n_b=n_b)  # (1, b_pad)
    return out[0, :B].reshape(B, 1)


# --------------------------- model (synthetic params) ------------------------
def init_params(key):
    """Deterministic synthetic parameters mirroring EmbeddingModel.__init__.

    emb_szs   = {'cat_a': (5, 2), 'cat_b': (10, 4)}   -> total_emb_var_ct = 6
    cat_cols  = ['cat_a', 'cat_b', 'cat_c']           -> non-embedded cat ct = 1
    cont_cols = ['cont_1']                            -> cont ct = 1
    layer_sizes = [32, 16], output_dim = 1; MLP input dim = 8
    """
    keys = jax.random.split(key, 16)
    params = {}
    # embeddings: uniform(-2/(dim+1), 2/(dim+1))  (norm_init_emb)
    params['emb_a'] = jax.random.uniform(keys[0], (5, 2), jnp.float32,
                                         minval=-2.0 / 3.0, maxval=2.0 / 3.0)
    params['emb_b'] = jax.random.uniform(keys[1], (10, 4), jnp.float32,
                                         minval=-2.0 / 5.0, maxval=2.0 / 5.0)

    d_in, h1, h2, d_out = 8, 32, 16, 1

    def kaiming(k, fan_in, fan_out):
        std = (2.0 / fan_in) ** 0.5
        return std * jax.random.normal(k, (fan_in, fan_out), jnp.float32)

    params['w1'] = kaiming(keys[2], d_in, h1)
    params['b1'] = 0.01 * jax.random.normal(keys[3], (1, h1), jnp.float32)
    params['w2'] = kaiming(keys[4], h1, h2)
    params['b2'] = 0.01 * jax.random.normal(keys[5], (1, h2), jnp.float32)
    params['w3'] = kaiming(keys[6], h2, d_out)
    params['b3'] = 0.01 * jax.random.normal(keys[7], (1, d_out), jnp.float32)

    # BatchNorm1d (eval) folded into per-feature scale/shift: y = s*x + t
    eps = 1e-5
    for name, k0, dim in (('1', 8, h1), ('2', 12, h2)):
        gamma = 1.0 + 0.1 * jax.random.normal(keys[k0], (1, dim), jnp.float32)
        beta = 0.1 * jax.random.normal(keys[k0 + 1], (1, dim), jnp.float32)
        mean = 0.1 * jax.random.normal(keys[k0 + 2], (1, dim), jnp.float32)
        var = jnp.abs(1.0 + 0.1 * jax.random.normal(keys[k0 + 3], (1, dim),
                                                    jnp.float32))
        s = gamma / jnp.sqrt(var + eps)
        params['s' + name] = s
        params['t' + name] = beta - s * mean
    return params


# --------------------------- references for checking -------------------------
def reference_forward(params, x):
    """f32 reference faithful to EmbeddingModel.forward (inference mode)."""
    P = jax.lax.Precision.HIGHEST
    lk_a = jnp.take(params['emb_a'], x[:, 0], axis=0)
    lk_b = jnp.take(params['emb_b'], x[:, 1], axis=0)
    xx = jnp.concatenate([lk_a, lk_b, x[:, 2:4].astype(jnp.float32)], axis=1)
    h = jnp.maximum(jnp.dot(xx, params['w1'], precision=P) + params['b1'], 0.0)
    h = h * params['s1'] + params['t1']
    h = jnp.maximum(jnp.dot(h, params['w2'], precision=P) + params['b2'], 0.0)
    h = h * params['s2'] + params['t2']
    return jax.nn.sigmoid(jnp.dot(h, params['w3'], precision=P) + params['b3'])


def emulate_kernel_math(kparams, x, n_a=5, n_b=10):
    """Plain-JAX mirror of the fused kernel math for tight checks."""
    w1p, w2, b2, w3, b3 = kparams
    f32 = jnp.float32
    x_t = x.T.astype(jnp.int32)
    n_rows = w1p.shape[1]
    row = jnp.arange(n_rows, dtype=jnp.int32)[:, None]
    cat = ((row == x_t[0:1, :]) | (row == (x_t[1:2, :] + n_a))
           | (row == n_rows - 1)).astype(f32)
    rhs = (cat
           + jnp.where(row == n_a + n_b, x_t[2:3, :].astype(f32), 0.0)
           + jnp.where(row == n_a + n_b + 1, x_t[3:4, :].astype(f32), 0.0))
    h = jnp.maximum(jnp.dot(w1p, rhs, preferred_element_type=f32), 0.0)
    h = jnp.maximum(jnp.dot(w2, h, preferred_element_type=f32) + b2, 0.0)
    z = jnp.dot(w3, h, preferred_element_type=f32) + b3
    return jax.nn.sigmoid(z).T                               # (B, 1)


def _make_x(key, B):
    ka, kb, kc, kd = jax.random.split(key, 4)
    return jnp.stack([
        jax.random.randint(ka, (B,), 0, 5),    # cat_a in [0, 5)
        jax.random.randint(kb, (B,), 0, 10),   # cat_b in [0, 10)
        jax.random.randint(kc, (B,), 0, 3),    # cat_c (non-embedded)
        jax.random.randint(kd, (B,), 0, 7),    # cont_1 (cast to float)
    ], axis=1).astype(jnp.int32)


def _check(out, ref, emu, tag):
    err_emu = jnp.abs(out - emu)   # kernel vs identical-math JAX emulation (tight)
    err_ref = jnp.abs(out - ref)   # kernel vs f32 module semantics
    assert float(jnp.max(err_emu)) < 2e-3, (tag, "emu", float(jnp.max(err_emu)))
    assert float(jnp.max(err_ref)) < 4e-2, (tag, "ref-max", float(jnp.max(err_ref)))
    assert float(jnp.mean(err_ref)) < 1e-2, (tag, "ref-mean", float(jnp.mean(err_ref)))


if __name__ == "__main__":
    key = jax.random.PRNGKey(0)
    pkey, xkey1, xkey2 = jax.random.split(key, 3)
    params = init_params(pkey)
    kparams = prep_kernel_params(params)

    # Small-batch check (single tile; batch padded 8 -> 128 lanes).
    B = 8
    x = _make_x(xkey1, B)
    out = jax.block_until_ready(embedding_model_forward(params, x))
    assert out.shape == (B, 1)
    _check(out, reference_forward(params, x), emulate_kernel_math(kparams, x), "B=8")

    # Multi-tile check (small tm_max forces grid > 1: padding + 'parallel' axis).
    B2 = 700
    x2 = _make_x(xkey2, B2)
    out2 = jax.block_until_ready(embedding_model_forward(params, x2, tm_max=128))
    assert out2.shape == (B2, 1)
    _check(out2, reference_forward(params, x2), emulate_kernel_math(kparams, x2),
           "B=700")

    print("KERNEL_OK")
</pallas_src>

<mosaic_0001>
module attributes {stable_mosaic.version = 11 : i64} {
  func.func @fused_embed_mlp_kernel(%arg0: i32, %arg1: memref<4x128xi32, #tpu.memory_space<vmem>>, %arg2: memref<32x18xf32, #tpu.memory_space<vmem>>, %arg3: memref<16x32xf32, #tpu.memory_space<vmem>>, %arg4: memref<16x1xf32, #tpu.memory_space<vmem>>, %arg5: memref<1x16xf32, #tpu.memory_space<vmem>>, %arg6: memref<1x1xf32, #tpu.memory_space<vmem>>, %arg7: memref<1x128xf32, #tpu.memory_space<vmem>>) attributes {dimension_semantics = [#tpu.dimension_semantics<parallel>], iteration_bounds = array<i64: 1>, scalar_prefetch = 0 : i64, scratch_operands = 0 : i64, tpu.core_type = #tpu.core_type<tc>, window_params = [{transform_indices = @transform_0, window_bounds = array<i64: 4, 128>}, {pipeline_mode = #tpu.pipeline_mode<synchronous>, transform_indices = @transform_1, window_bounds = array<i64: 32, 18>}, {pipeline_mode = #tpu.pipeline_mode<synchronous>, transform_indices = @transform_2, window_bounds = array<i64: 16, 32>}, {pipeline_mode = #tpu.pipeline_mode<synchronous>, transform_indices = @transform_3, window_bounds = array<i64: 16, 1>}, {pipeline_mode = #tpu.pipeline_mode<synchronous>, transform_indices = @transform_4, window_bounds = array<i64: 1, 16>}, {pipeline_mode = #tpu.pipeline_mode<synchronous>, transform_indices = @transform_5, window_bounds = array<i64: 1, 1>}, {transform_indices = @transform_6, window_bounds = array<i64: 1, 128>}]} {
    %c0 = arith.constant 0 : index
    %c0_0 = arith.constant 0 : index
    %0 = vector.load %arg1[%c0, %c0_0] : memref<4x128xi32, #tpu.memory_space<vmem>>, vector<1x128xi32>
    %c1 = arith.constant 1 : index
    %c0_1 = arith.constant 0 : index
    %1 = vector.load %arg1[%c1, %c0_1] : memref<4x128xi32, #tpu.memory_space<vmem>>, vector<1x128xi32>
    %2 = tpu.iota {dimensions = array<i32: 0>} : vector<18x128xi32>
    %3 = vector.broadcast %0 : vector<1x128xi32> to vector<18x128xi32>
    %4 = arith.cmpi eq, %2, %3 : vector<18x128xi32>
    %c5_i32 = arith.constant 5 : i32
    %5 = vector.broadcast %c5_i32 : i32 to vector<1x128xi32>
    %6 = arith.addi %1, %5 : vector<1x128xi32>
    %7 = vector.broadcast %6 : vector<1x128xi32> to vector<18x128xi32>
    %8 = arith.cmpi eq, %2, %7 : vector<18x128xi32>
    %9 = arith.ori %4, %8 : vector<18x128xi1>
    %c17_i32 = arith.constant 17 : i32
    %10 = vector.broadcast %c17_i32 : i32 to vector<18x128xi32>
    %11 = arith.cmpi eq, %2, %10 : vector<18x128xi32>
    %12 = arith.ori %9, %11 : vector<18x128xi1>
    %13 = arith.extui %12 : vector<18x128xi1> to vector<18x128xi32>
    %14 = arith.sitofp %13 : vector<18x128xi32> to vector<18x128xf32>
    %c2 = arith.constant 2 : index
    %c0_2 = arith.constant 0 : index
    %15 = vector.load %arg1[%c2, %c0_2] : memref<4x128xi32, #tpu.memory_space<vmem>>, vector<1x128xi32>
    %16 = arith.sitofp %15 : vector<1x128xi32> to vector<1x128xf32>
    %c3 = arith.constant 3 : index
    %c0_3 = arith.constant 0 : index
    %17 = vector.load %arg1[%c3, %c0_3] : memref<4x128xi32, #tpu.memory_space<vmem>>, vector<1x128xi32>
    %18 = arith.sitofp %17 : vector<1x128xi32> to vector<1x128xf32>
    %c15_i32 = arith.constant 15 : i32
    %19 = vector.broadcast %c15_i32 : i32 to vector<18x128xi32>
    %20 = arith.cmpi eq, %2, %19 : vector<18x128xi32>
    %cst = arith.constant 0.000000e+00 : f32
    %21 = vector.shape_cast %16 : vector<1x128xf32> to vector<1x128xf32>
    %22 = vector.broadcast %21 : vector<1x128xf32> to vector<18x128xf32>
    %23 = vector.broadcast %cst : f32 to vector<18x128xf32>
    %24 = arith.select %20, %22, %23 : vector<18x128xi1>, vector<18x128xf32>
    %25 = arith.addf %14, %24 : vector<18x128xf32>
    %c16_i32 = arith.constant 16 : i32
    %26 = vector.broadcast %c16_i32 : i32 to vector<18x128xi32>
    %27 = arith.cmpi eq, %2, %26 : vector<18x128xi32>
    %cst_4 = arith.constant 0.000000e+00 : f32
    %28 = vector.shape_cast %18 : vector<1x128xf32> to vector<1x128xf32>
    %29 = vector.broadcast %28 : vector<1x128xf32> to vector<18x128xf32>
    %30 = vector.broadcast %cst_4 : f32 to vector<18x128xf32>
    %31 = arith.select %27, %29, %30 : vector<18x128xi1>, vector<18x128xf32>
    %32 = arith.addf %25, %31 : vector<18x128xf32>
    %c0_5 = arith.constant 0 : index
    %c0_6 = arith.constant 0 : index
    %33 = vector.load %arg2[%c0_5, %c0_6] : memref<32x18xf32, #tpu.memory_space<vmem>>, vector<32x18xf32>
    %cst_7 = arith.constant dense<0.000000e+00> : vector<32x128xf32>
    %34 = tpu.matmul %33, %32, %cst_7 {dimension_numbers = #tpu.dot_dimension_numbers<[1], [0], [0], [1], [0, 0, 1, 1], [], []>} : vector<32x18xf32>, vector<18x128xf32>, vector<32x128xf32> -> vector<32x128xf32>
    %cst_8 = arith.constant 0.000000e+00 : f32
    %35 = vector.broadcast %cst_8 : f32 to vector<32x128xf32>
    %36 = arith.maximumf %34, %35 : vector<32x128xf32>
    %c0_9 = arith.constant 0 : index
    %c0_10 = arith.constant 0 : index
    %37 = vector.load %arg3[%c0_9, %c0_10] : memref<16x32xf32, #tpu.memory_space<vmem>>, vector<16x32xf32>
    %cst_11 = arith.constant dense<0.000000e+00> : vector<16x128xf32>
    %38 = tpu.matmul %37, %36, %cst_11 {dimension_numbers = #tpu.dot_dimension_numbers<[1], [0], [0], [1], [0, 0, 1, 1], [], []>} : vector<16x32xf32>, vector<32x128xf32>, vector<16x128xf32> -> vector<16x128xf32>
    %c0_12 = arith.constant 0 : index
    %c0_13 = arith.constant 0 : index
    %39 = vector.load %arg4[%c0_12, %c0_13] : memref<16x1xf32, #tpu.memory_space<vmem>>, vector<16x1xf32>
    %40 = vector.broadcast %39 : vector<16x1xf32> to vector<16x128xf32>
    %41 = arith.addf %38, %40 : vector<16x128xf32>
    %cst_14 = arith.constant 0.000000e+00 : f32
    %42 = vector.broadcast %cst_14 : f32 to vector<16x128xf32>
    %43 = arith.maximumf %41, %42 : vector<16x128xf32>
    %c0_15 = arith.constant 0 : index
    %c0_16 = arith.constant 0 : index
    %44 = vector.load %arg5[%c0_15, %c0_16] : memref<1x16xf32, #tpu.memory_space<vmem>>, vector<1x16xf32>
    %cst_17 = arith.constant dense<0.000000e+00> : vector<1x128xf32>
    %45 = tpu.matmul %44, %43, %cst_17 {dimension_numbers = #tpu.dot_dimension_numbers<[1], [0], [0], [1], [0, 0, 1, 1], [], []>} : vector<1x16xf32>, vector<16x128xf32>, vector<1x128xf32> -> vector<1x128xf32>
    %c0_18 = arith.constant 0 : index
    %c0_19 = arith.constant 0 : index
    %46 = vector.load %arg6[%c0_18, %c0_19] : memref<1x1xf32, #tpu.memory_space<vmem>>, vector<1x1xf32>
    %47 = vector.broadcast %46 : vector<1x1xf32> to vector<1x128xf32>
    %48 = arith.addf %45, %47 : vector<1x128xf32>
    %49 = arith.negf %48 : vector<1x128xf32>
    %50 = math.exp %49 : vector<1x128xf32>
    %cst_20 = arith.constant 1.000000e+00 : f32
    %51 = vector.broadcast %cst_20 : f32 to vector<1x128xf32>
    %52 = arith.addf %51, %50 : vector<1x128xf32>
    %53 = arith.divf %51, %52 : vector<1x128xf32>
    %c0_21 = arith.constant 0 : index
    %c0_22 = arith.constant 0 : index
    %54 = vector.load %arg7[%c0_21, %c0_22] : memref<1x128xf32, #tpu.memory_space<vmem>>, vector<1x128xf32>
    tpu.vector_store %arg7[%c0_21, %c0_22], %53 {strides = array<i32>} : memref<1x128xf32, #tpu.memory_space<vmem>>, vector<1x128xf32>,
    return
  }
  func.func @transform_0(%arg0: i32) -> (i32, i32) {
    %c0_i32 = arith.constant 0 : i32
    %c0_i32_0 = arith.constant 0 : i32
    return %c0_i32, %arg0 : i32, i32
  }
  func.func @transform_1(%arg0: i32) -> (i32, i32) {
    %c0_i32 = arith.constant 0 : i32
    %c0_i32_0 = arith.constant 0 : i32
    %c0_i32_1 = arith.constant 0 : i32
    return %c0_i32, %c0_i32_0 : i32, i32
  }
  func.func @transform_2(%arg0: i32) -> (i32, i32) {
    %c0_i32 = arith.constant 0 : i32
    %c0_i32_0 = arith.constant 0 : i32
    %c0_i32_1 = arith.constant 0 : i32
    return %c0_i32, %c0_i32_0 : i32, i32
  }
  func.func @transform_3(%arg0: i32) -> (i32, i32) {
    %c0_i32 = arith.constant 0 : i32
    %c0_i32_0 = arith.constant 0 : i32
    %c0_i32_1 = arith.constant 0 : i32
    return %c0_i32, %c0_i32_0 : i32, i32
  }
  func.func @transform_4(%arg0: i32) -> (i32, i32) {
    %c0_i32 = arith.constant 0 : i32
    %c0_i32_0 = arith.constant 0 : i32
    %c0_i32_1 = arith.constant 0 : i32
    return %c0_i32, %c0_i32_0 : i32, i32
  }
  func.func @transform_5(%arg0: i32) -> (i32, i32) {
    %c0_i32 = arith.constant 0 : i32
    %c0_i32_0 = arith.constant 0 : i32
    %c0_i32_1 = arith.constant 0 : i32
    return %c0_i32, %c0_i32_0 : i32, i32
  }
  func.func @transform_6(%arg0: i32) -> (i32, i32) {
    %c0_i32 = arith.constant 0 : i32
    %c0_i32_0 = arith.constant 0 : i32
    return %c0_i32, %arg0 : i32, i32
  }
}

</mosaic_0001>

<llo_original>
// kernel: embedding_model_forward.1
$region0: #{embedding_model_forward.1}
  #allocation0 [shape = 'u32[]', space=smem, size = 0x4, offset = 0x4, fixed_abs, tag = 'smem constant byte address 0x4 - core index']
  #allocation1 [shape = 'u32[144,128]{1,0:T(1,128)}', space=vmem, size = 0x12000, scoped, tag = 'internal scratch']
  #allocation2 [shape = 'f32[1,1]{1,0:T(1,128)S(1)}', space=vmem, size = 0x200, scoped, tag = 'scoped memory for embedding_model_forward.1']
  %s0 = inlined_call_operand.vmem [shape: s32[4,128], index: 0, kind: input, shape index: {}]
  %s1 = inlined_call_operand.vmem [shape: f32[32,18], index: 1, kind: input, shape index: {}]
  %s2 = inlined_call_operand.vmem [shape: f32[16,32], index: 2, kind: input, shape index: {}]
  %s3 = inlined_call_operand.vmem [shape: f32[16,1], index: 3, kind: input, shape index: {}]
  %s4 = inlined_call_operand.vmem [shape: f32[1,16], index: 4, kind: input, shape index: {}]
  %s5 = inlined_call_operand.<no memory space> [shape: f32[1,1], index: 5, kind: input, shape index: {}]
  %s6 = inlined_call_operand.vmem [shape: f32[1,128], index: 6, kind: output, shape index: {}]
  %s7 = sld [smem:[#allocation0]]
  $region34: #{embedding_model_forward.1} parent=0
    _
  %s9 = ssub.s32 1, %s7
  %s10 = scalar_select 0, %s9, %s7
  %v11 = vstv %s5
  %12 = vst [vmem:[#allocation2] sm:$0x1] %v11
  // Predicated region
  $region2: #{embedding_model_forward.1} parent=0 // pred_check
    _
  $region3: #{embedding_model_forward.1} parent=0 // pred_check_branch
    %14 = sbr.rel (0) target = $region5
  $region4: #{embedding_model_forward.1} parent=0 // pred_region
    _
  $region5: #{embedding_model_forward.1} parent=0 // pred_fallthru
    _
  // Predicated region
  $region6: #{embedding_model_forward.1} parent=0 // pred_check
    _
  $region7: #{embedding_model_forward.1} parent=0 // pred_check_branch
    %16 = sbr.rel (0) target = $region9
  $region8: #{embedding_model_forward.1} parent=0 // pred_region
    _
  $region9: #{embedding_model_forward.1} parent=0 // pred_fallthru
    _
  // Predicated region
  $region10: #{embedding_model_forward.1} parent=0 // pred_check
    _
  $region11: #{embedding_model_forward.1} parent=0 // pred_check_branch
    %18 = sbr.rel (0) target = $region13
  $region12: #{embedding_model_forward.1} parent=0 // pred_region
    _
  $region13: #{embedding_model_forward.1} parent=0 // pred_fallthru
    _
  // Predicated region
  $region14: #{embedding_model_forward.1} parent=0 // pred_check
    _
  $region15: #{embedding_model_forward.1} parent=0 // pred_check_branch
    %20 = sbr.rel (0) target = $region17
  $region16: #{embedding_model_forward.1} parent=0 // pred_region
    _
  $region17: #{embedding_model_forward.1} parent=0 // pred_fallthru
    _
  // Predicated region
  $region18: #{embedding_model_forward.1} parent=0 // pred_check
    _
  $region19: #{embedding_model_forward.1} parent=0 // pred_check_branch
    %22 = sbr.rel (0) target = $region21
  $region20: #{embedding_model_forward.1} parent=0 // pred_region
    _
  $region21: #{embedding_model_forward.1} parent=0 // pred_fallthru
    _
  // Predicated region
  $region22: #{embedding_model_forward.1} parent=0 // pred_check
    _
  $region23: #{embedding_model_forward.1} parent=0 // pred_check_branch
    %24 = sbr.rel (0) target = $region25
  $region24: #{embedding_model_forward.1} parent=0 // pred_region
    _
  $region25: #{embedding_model_forward.1} parent=0 // pred_fallthru
    _
  %v25 = vld [vmem:[%s0] sm:$0x1]
  %v26 = vld [vmem:[%s0 + $0x1] sm:$0x1]
  %v27 = vlaneseq
  %v28 = vshrl.u32 %v27, 7
  %v29 = vadd.s32 %v28, 8
  %v30 = vadd.s32 %v28, 16
  %v31 = vlaneseq
  %v32 = vshrl.u32 %v31, 7
  %v33 = vsub.s32 0, %v32
  %v34 = vrot.slane %v25, %v33
  %vm35 = vcmp.eq.s32.totalorder %v28, %v34
  %vm36 = vcmp.eq.s32.totalorder %v29, %v34
  %vm37 = vcmp.eq.s32.totalorder %v30, %v34
  %v38 = vadd.s32 %v26, 5
  %v39 = vlaneseq
  %v40 = vshrl.u32 %v39, 7
  %v41 = vsub.s32 0, %v40
  %v42 = vrot.slane %v38, %v41
  %vm43 = vcmp.eq.s32.totalorder %v28, %v42
  %vm44 = vcmp.eq.s32.totalorder %v29, %v42
  %vm45 = vcmp.eq.s32.totalorder %v30, %v42
  %vm46 = vmor %vm35, %vm43
  %vm47 = vmor %vm36, %vm44
  %vm48 = vmor %vm37, %vm45
  %vm49 = vcmp.eq.s32.totalorder %v28, 17
  %vm50 = vcmp.eq.s32.totalorder %v29, 17
  %vm51 = vcmp.eq.s32.totalorder %v30, 17
  %vm52 = vmor %vm46, %vm49
  %vm53 = vmor %vm47, %vm50
  %vm54 = vmor %vm48, %vm51
  %v55 = vsel %vm52, 1, 0
  %v56 = vsel %vm53, 1, 0
  %v57 = vsel %vm54, 1, 0
  %v58 = vcvt.s32.f32 %v55
  %v59 = vcvt.s32.f32 %v56
  %v60 = vcvt.s32.f32 %v57
  %v61 = vld [vmem:[%s0 + $0x2] sm:$0x1]
  %v62 = vcvt.s32.f32 %v61
  %v63 = vld [vmem:[%s0 + $0x3] sm:$0x1]
  %v64 = vcvt.s32.f32 %v63
  %vm65 = vcmp.eq.s32.totalorder %v28, 15
  %vm66 = vcmp.eq.s32.totalorder %v29, 15
  %vm67 = vcmp.eq.s32.totalorder %v30, 15
  %v68 = vlaneseq
  %v69 = vshrl.u32 %v68, 7
  %v70 = vsub.s32 0, %v69
  %v71 = vrot.slane %v62, %v70
  %v72 = vsel %vm65, %v71, 0.0
  %v73 = vsel %vm66, %v71, 0.0
  %v74 = vsel %vm67, %v71, 0.0
  %v75 = vadd.f32 %v58, %v72
  %v76 = vadd.f32 %v59, %v73
  %v77 = vadd.f32 %v60, %v74
  %vm78 = vcmp.eq.s32.totalorder %v28, 16
  %vm79 = vcmp.eq.s32.totalorder %v29, 16
  %vm80 = vcmp.eq.s32.totalorder %v30, 16
  %v81 = vlaneseq
  %v82 = vshrl.u32 %v81, 7
  %v83 = vsub.s32 0, %v82
  %v84 = vrot.slane %v64, %v83
  %v85 = vsel %vm78, %v84, 0.0
  %v86 = vsel %vm79, %v84, 0.0
  %v87 = vsel %vm80, %v84, 0.0
  %v88 = vadd.f32 %v75, %v85
  %v89 = vadd.f32 %v76, %v86
  %v90 = vadd.f32 %v77, %v87
  %v91 = vld [vmem:[%s1] sm:$0xff]
  %v92 = vld [vmem:[%s1 + $0x8] sm:$0xff]
  %v93 = vld [vmem:[%s1 + $0x10] sm:$0xff]
  %v94 = vld [vmem:[%s1 + $0x18] sm:$0xff]
  %vm95 = vcmask 146432
  %v97 = vsel %vm95, %v91, 0
  %v100 = vsel %vm95, %v92, 0
  %v103 = vsel %vm95, %v93, 0
  %v106 = vsel %vm95, %v94, 0
  %vm108 = vcmask 1041408
  %v110 = vsel %vm108, %v90, 0
  %112 = vmatprep.subr.mxu0 0.0
  %113 = vmatpush1.msra.mxu0 %v88
  %114 = vmatprep.subr.mxu0 0.0
  %115 = vmatpush1.msra.mxu0 %v89
  %116 = vmatprep.subr.mxu0 0.0
  %117 = vmatpush1.msra.mxu0 %v110
  %118 = vmatprep.subr.mxu0 0.0
  %119 = vmatpush1.msra.mxu0 0.0
  %120 = vmatprep.subr.mxu0 0.0
  %121 = vmatpush1.msra.mxu0 0.0
  %122 = vmatprep.subr.mxu0 0.0
  %123 = vmatpush1.msra.mxu0 0.0
  %124 = vmatprep.subr.mxu0 0.0
  %125 = vmatpush1.msra.mxu0 0.0
  %126 = vmatprep.subr.mxu0 0.0
  %127 = vmatpush1.msra.mxu0 0.0
  %128 = vmatprep.subr.mxu0 0.0
  %129 = vmatpush1.msra.mxu0 0.0
  %130 = vmatprep.subr.mxu0 0.0
  %131 = vmatpush1.msra.mxu0 0.0
  %132 = vmatprep.subr.mxu0 0.0
  %133 = vmatpush1.msra.mxu0 0.0
  %134 = vmatprep.subr.mxu0 0.0
  %135 = vmatpush1.msra.mxu0 0.0
  %136 = vmatprep.subr.mxu0 0.0
  %137 = vmatpush1.msra.mxu0 0.0
  %138 = vmatprep.subr.mxu0 0.0
  %139 = vmatpush1.msra.mxu0 0.0
  %140 = vmatprep.subr.mxu0 0.0
  %141 = vmatpush1.msra.mxu0 0.0
  %142 = vmatprep.subr.mxu0 0.0
  %143 = vmatpush1.msra.mxu0 0.0
  %144 = vmatprep.subr.mxu0 0.0
  %145 = vmatpush1.msra.mxu0 0.0
  %146 = vmatprep.subr.mxu0 0.0
  %147 = vmatpush1.msra.mxu0 0.0
  %148 = vmatprep.subr.mxu0 0.0
  %149 = vmatpush1.msra.mxu0 0.0
  %150 = vmatprep.subr.mxu0 0.0
  %151 = vmatpush1.msra.mxu0 0.0
  %152 = vmatprep.subr.mxu0 0.0
  %153 = vmatpush1.msra.mxu0 0.0
  %154 = vmatprep.subr.mxu0 0.0
  %155 = vmatpush1.msra.mxu0 0.0
  %156 = vmatprep.subr.mxu0 0.0
  %157 = vmatpush1.msra.mxu0 0.0
  %158 = vmatprep.subr.mxu0 0.0
  %159 = vmatpush1.msra.mxu0 0.0
  %160 = vmatprep.subr.mxu0 0.0
  %161 = vmatpush1.msra.mxu0 0.0
  %162 = vmatprep.subr.mxu0 0.0
  %163 = vmatpush1.msra.mxu0 0.0
  %164 = vmatprep.subr.mxu0 0.0
  %165 = vmatpush1.msra.mxu0 0.0
  %166 = vmatprep.subr.mxu0 0.0
  %167 = vmatpush1.msra.mxu0 0.0
  %168 = vmatprep.subr.mxu0 0.0
  %169 = vmatpush1.msra.mxu0 0.0
  %170 = vmatprep.subr.mxu0 0.0
  %171 = vmatpush1.msra.mxu0 0.0
  %172 = vmatprep.subr.mxu0 0.0
  %173 = vmatpush1.msra.mxu0 0.0
  %174 = vmatprep.subr.mxu0 0.0
  %175 = vmatpush1.msra.mxu0 0.0
  %176 = vmatprep.mubr.f32.mxu0 0.0
  %177 = vmatmul.mubr.f32.gmra.mrb[0].mxu0 %v97
  %v178 = vpop.f32.mrb[0].mxu0
  %v179 = vadd.f32 0.0, %v178
  %v180 = vpop.f32.mrb[0].mxu0
  %181 = vmatprep.mubr.f32.mxu0 0.0
  %182 = vmatmul.mubr.f32.gmra.mrb[0].mxu0 %v100
  %v183 = vpop.f32.mrb[0].mxu0
  %v184 = vadd.f32 0.0, %v183
  %v185 = vpop.f32.mrb[0].mxu0
  %186 = vmatprep.mubr.f32.mxu0 0.0
  %187 = vmatmul.mubr.f32.gmra.mrb[0].mxu0 %v103
  %v188 = vpop.f32.mrb[0].mxu0
  %v189 = vadd.f32 0.0, %v188
  %v190 = vpop.f32.mrb[0].mxu0
  %191 = vmatprep.mubr.f32.mxu0 0.0
  %192 = vmatmul.mubr.f32.gmra.mrb[0].mxu0 %v106
  %v193 = vpop.f32.mrb[0].mxu0
  %v194 = vadd.f32 0.0, %v193
  %v195 = vpop.f32.mrb[0].mxu0
  %196 = vdwg.mxu0
  %v197 = vmax.f32 %v179, 0.0
  %v198 = vmax.f32 %v184, 0.0
  %v199 = vmax.f32 %v189, 0.0
  %v200 = vmax.f32 %v194, 0.0
  %v201 = vld [vmem:[%s2] sm:$0xff]
  %v202 = vld [vmem:[%s2 + $0x8] sm:$0xff]
  %v203 = vld [vmem:[%s3] sm:$0xff]
  %v204 = vld [vmem:[%s3 + $0x8] sm:$0xff]
  %206 = vset.pattern.permute.xlu0 0
  %207 = vperm.xlu0 %206, %v203
  %v208 = vpop.permute.xlu0 %207
  %211 = vset.pattern.permute.xlu0 0
  %212 = vperm.xlu0 %211, %v204
  %v213 = vpop.permute.xlu0 %212
  %vm215 = vcmask 261120
  %v217 = vsel %vm215, %v201, 0
  %v220 = vsel %vm215, %v202, 0
  %222 = vmatprep.subr.mxu0 0.0
  %223 = vmatpush1.msra.mxu0 %v197
  %224 = vmatprep.subr.mxu0 0.0
  %225 = vmatpush1.msra.mxu0 %v198
  %226 = vmatprep.subr.mxu0 0.0
  %227 = vmatpush1.msra.mxu0 %v199
  %228 = vmatprep.subr.mxu0 0.0
  %229 = vmatpush1.msra.mxu0 %v200
  %230 = vmatprep.subr.mxu0 0.0
  %231 = vmatpush1.msra.mxu0 0.0
  %232 = vmatprep.subr.mxu0 0.0
  %233 = vmatpush1.msra.mxu0 0.0
  %234 = vmatprep.subr.mxu0 0.0
  %235 = vmatpush1.msra.mxu0 0.0
  %236 = vmatprep.subr.mxu0 0.0
  %237 = vmatpush1.msra.mxu0 0.0
  %238 = vmatprep.subr.mxu0 0.0
  %239 = vmatpush1.msra.mxu0 0.0
  %240 = vmatprep.subr.mxu0 0.0
  %241 = vmatpush1.msra.mxu0 0.0
  %242 = vmatprep.subr.mxu0 0.0
  %243 = vmatpush1.msra.mxu0 0.0
  %244 = vmatprep.subr.mxu0 0.0
  %245 = vmatpush1.msra.mxu0 0.0
  %246 = vmatprep.subr.mxu0 0.0
  %247 = vmatpush1.msra.mxu0 0.0
  %248 = vmatprep.subr.mxu0 0.0
  %249 = vmatpush1.msra.mxu0 0.0
  %250 = vmatprep.subr.mxu0 0.0
  %251 = vmatpush1.msra.mxu0 0.0
  %252 = vmatprep.subr.mxu0 0.0
  %253 = vmatpush1.msra.mxu0 0.0
  %254 = vmatprep.subr.mxu0 0.0
  %255 = vmatpush1.msra.mxu0 0.0
  %256 = vmatprep.subr.mxu0 0.0
  %257 = vmatpush1.msra.mxu0 0.0
  %258 = vmatprep.subr.mxu0 0.0
  %259 = vmatpush1.msra.mxu0 0.0
  %260 = vmatprep.subr.mxu0 0.0
  %261 = vmatpush1.msra.mxu0 0.0
  %262 = vmatprep.subr.mxu0 0.0
  %263 = vmatpush1.msra.mxu0 0.0
  %264 = vmatprep.subr.mxu0 0.0
  %265 = vmatpush1.msra.mxu0 0.0
  %266 = vmatprep.subr.mxu0 0.0
  %267 = vmatpush1.msra.mxu0 0.0
  %268 = vmatprep.subr.mxu0 0.0
  %269 = vmatpush1.msra.mxu0 0.0
  %270 = vmatprep.subr.mxu0 0.0
  %271 = vmatpush1.msra.mxu0 0.0
  %272 = vmatprep.subr.mxu0 0.0
  %273 = vmatpush1.msra.mxu0 0.0
  %274 = vmatprep.subr.mxu0 0.0
  %275 = vmatpush1.msra.mxu0 0.0
  %276 = vmatprep.subr.mxu0 0.0
  %277 = vmatpush1.msra.mxu0 0.0
  %278 = vmatprep.subr.mxu0 0.0
  %279 = vmatpush1.msra.mxu0 0.0
  %280 = vmatprep.subr.mxu0 0.0
  %281 = vmatpush1.msra.mxu0 0.0
  %282 = vmatprep.subr.mxu0 0.0
  %283 = vmatpush1.msra.mxu0 0.0
  %284 = vmatprep.subr.mxu0 0.0
  %285 = vmatpush1.msra.mxu0 0.0
  %286 = vmatprep.mubr.f32.mxu0 0.0
  %287 = vmatmul.mubr.f32.gmra.mrb[0].mxu0 %v217
  %v288 = vpop.f32.mrb[0].mxu0
  %v289 = vadd.f32 %v208, %v288
  %v290 = vpop.f32.mrb[0].mxu0
  %291 = vmatprep.mubr.f32.mxu0 0.0
  %292 = vmatmul.mubr.f32.gmra.mrb[0].mxu0 %v220
  %v293 = vpop.f32.mrb[0].mxu0
  %v294 = vadd.f32 %v213, %v293
  %v295 = vpop.f32.mrb[0].mxu0
  %296 = vdwg.mxu0
  %v297 = vmax.f32 %v289, 0.0
  %v298 = vmax.f32 %v294, 0.0
  %v299 = vld [vmem:[%s4] sm:$0x1]
  %v300 = vld [vmem:[#allocation2] sm:$0x1]
  %302 = vset.pattern.permute.xlu0 0
  %303 = vperm.xlu0 %302, %v300
  %v304 = vpop.permute.xlu0 %303
  %v306 = vlaneseq
  %v307 = vshrl.u32 %v306, 7
  %v308 = vsub.s32 0, %v307
  %v309 = vrot.slane %v304, %v308
  %vm310 = vcmask 130048
  %v312 = vsel %vm310, %v299, 0
  %314 = vmatprep.subr.mxu0 0.0
  %315 = vmatpush1.msra.mxu0 %v297
  %316 = vmatprep.subr.mxu0 0.0
  %317 = vmatpush1.msra.mxu0 %v298
  %318 = vmatprep.subr.mxu0 0.0
  %319 = vmatpush1.msra.mxu0 0.0
  %320 = vmatprep.subr.mxu0 0.0
  %321 = vmatpush1.msra.mxu0 0.0
  %322 = vmatprep.subr.mxu0 0.0
  %323 = vmatpush1.msra.mxu0 0.0
  %324 = vmatprep.subr.mxu0 0.0
  %325 = vmatpush1.msra.mxu0 0.0
  %326 = vmatprep.subr.mxu0 0.0
  %327 = vmatpush1.msra.mxu0 0.0
  %328 = vmatprep.subr.mxu0 0.0
  %329 = vmatpush1.msra.mxu0 0.0
  %330 = vmatprep.subr.mxu0 0.0
  %331 = vmatpush1.msra.mxu0 0.0
  %332 = vmatprep.subr.mxu0 0.0
  %333 = vmatpush1.msra.mxu0 0.0
  %334 = vmatprep.subr.mxu0 0.0
  %335 = vmatpush1.msra.mxu0 0.0
  %336 = vmatprep.subr.mxu0 0.0
  %337 = vmatpush1.msra.mxu0 0.0
  %338 = vmatprep.subr.mxu0 0.0
  %339 = vmatpush1.msra.mxu0 0.0
  %340 = vmatprep.subr.mxu0 0.0
  %341 = vmatpush1.msra.mxu0 0.0
  %342 = vmatprep.subr.mxu0 0.0
  %343 = vmatpush1.msra.mxu0 0.0
  %344 = vmatprep.subr.mxu0 0.0
  %345 = vmatpush1.msra.mxu0 0.0
  %346 = vmatprep.subr.mxu0 0.0
  %347 = vmatpush1.msra.mxu0 0.0
  %348 = vmatprep.subr.mxu0 0.0
  %349 = vmatpush1.msra.mxu0 0.0
  %350 = vmatprep.subr.mxu0 0.0
  %351 = vmatpush1.msra.mxu0 0.0
  %352 = vmatprep.subr.mxu0 0.0
  %353 = vmatpush1.msra.mxu0 0.0
  %354 = vmatprep.subr.mxu0 0.0
  %355 = vmatpush1.msra.mxu0 0.0
  %356 = vmatprep.subr.mxu0 0.0
  %357 = vmatpush1.msra.mxu0 0.0
  %358 = vmatprep.subr.mxu0 0.0
  %359 = vmatpush1.msra.mxu0 0.0
  %360 = vmatprep.subr.mxu0 0.0
  %361 = vmatpush1.msra.mxu0 0.0
  %362 = vmatprep.subr.mxu0 0.0
  %363 = vmatpush1.msra.mxu0 0.0
  %364 = vmatprep.subr.mxu0 0.0
  %365 = vmatpush1.msra.mxu0 0.0
  %366 = vmatprep.subr.mxu0 0.0
  %367 = vmatpush1.msra.mxu0 0.0
  %368 = vmatprep.subr.mxu0 0.0
  %369 = vmatpush1.msra.mxu0 0.0
  %370 = vmatprep.subr.mxu0 0.0
  %371 = vmatpush1.msra.mxu0 0.0
  %372 = vmatprep.subr.mxu0 0.0
  %373 = vmatpush1.msra.mxu0 0.0
  %374 = vmatprep.subr.mxu0 0.0
  %375 = vmatpush1.msra.mxu0 0.0
  %376 = vmatprep.subr.mxu0 0.0
  %377 = vmatpush1.msra.mxu0 0.0
  %378 = vmatprep.mubr.f32.mxu0 0.0
  %379 = vmatmul.mubr.f32.gmra.mrb[0].mxu0 %v312
  %v380 = vpop.f32.mrb[0].mxu0
  %v381 = vadd.f32 %v309, %v380
  %v382 = vpop.f32.mrb[0].mxu0
  %383 = vdwg.mxu0
  %v384 = vxor.u32 %v381, 2147483648
  %v385 = vmul.f32 %v384, 1.442695
  %v386 = vpow.pop %v385
  %v387 = vadd.f32 %v386, 1.0
  %v388 = vrcp.pop %v387
  %v389 = vmul.f32 1.0, %v388
  %390 = vst [vmem:[%s6] sm:$0x1] %v389
  // Predicated region
  $region26: #{embedding_model_forward.1} parent=0 // pred_check
    _
  $region27: #{embedding_model_forward.1} parent=0 // pred_check_branch
    %392 = sbr.rel (0) target = $region29
  $region28: #{embedding_model_forward.1} parent=0 // pred_region
    _
  $region29: #{embedding_model_forward.1} parent=0 // pred_fallthru
    _
  // Predicated region
  $region30: #{embedding_model_forward.1} parent=0 // pred_check
    _
  $region31: #{embedding_model_forward.1} parent=0 // pred_check_branch
    %394 = sbr.rel (0) target = $region33
  $region32: #{embedding_model_forward.1} parent=0 // pred_region
    _
  $region33: #{embedding_model_forward.1} parent=0 // pred_fallthru
    _

</llo_original>
